<compile_context>
chip_gen: v5e
topology: v5e:2x2
jax: 0.10.0
libtpu: 0.0.40
codegen_flags: <defaults>
</compile_context>

<pallas_src>
import jax
import jax.numpy as jnp
from jax.experimental import pallas as pl
from jax.experimental.pallas import tpu as pltpu


def _attention_all_heads_kernel(ab_ref, vir_cf_ref, vir_sm_ref, bias_ref,
                                wab_ref, wv_ref, bsum_ref, out_ref):
    """One batch element per grid step; all heads batched inside.

    ab_ref     : (1, C_ab, L_ab)  antibody, channels-first (original layout)
    vir_cf_ref : (1, C_v,  L_v)   virus, channels-first (for the projection)
    vir_sm_ref : (1, L_v,  C_v)   virus, sequence-major (for the final bmm)
    bias_ref   : (1, L_ab, L_v)   additive attention bias
    wab_ref    : (H, C_ab)  VMEM  all heads' antibody 1x1-conv weights
    wv_ref     : (H, C_v)   VMEM  all heads' virus 1x1-conv weights
    bsum_ref   : (H, 1)     VMEM  per-head folded conv-bias sum b_ab[h]+b_v[h]
    out_ref    : (1, H*L_ab, C_v) per-head outputs, stacked head-major on rows
    """
    num_heads = wv_ref.shape[0]
    l_ab = ab_ref.shape[2]
    l_v = vir_cf_ref.shape[2]

    # All-heads 1x1-conv projections: two bf16 MXU matmuls, fp32 accumulation.
    #   (H, C_ab) @ (C_ab, L_ab) -> (H, L_ab)
    #   (H, C_v)  @ (C_v,  L_v ) -> (H, L_v)
    proj_ab = jnp.dot(wab_ref[...], ab_ref[0],
                      preferred_element_type=jnp.float32)
    proj_v = jnp.dot(wv_ref[...], vir_cf_ref[0],
                     preferred_element_type=jnp.float32)
    # Fold the (b_ab + b_v) conv biases once (fp32 VMEM vector, no SMEM reads).
    proj_ab = proj_ab + bsum_ref[...]

    # Head-batched scores: s[h, i, j] = proj_ab[h, i] + proj_v[h, j].
    s = proj_ab[:, :, None] + proj_v[:, None, :]          # (H, L_ab, L_v)
    s = jnp.where(s >= 0.0, s, 0.2 * s)                   # leaky_relu(0.2)
    s = s + bias_ref[...].astype(jnp.float32)             # + bias_mat (bcast over H)

    # Batched max-stabilized softmax over the virus axis (fp32 everywhere:
    # valid on v5e which has no bf16 VPU/EUP).
    m = jnp.max(s, axis=-1, keepdims=True)
    e = jnp.exp(s - m)
    denom = jnp.sum(e, axis=-1, keepdims=True)
    p = e * pl.reciprocal(denom, approx=True)              # EUP reciprocal

    # TODO(synk): F.dropout(p=0.15) omitted — inference path (identity when training=False).

    # Single MXU matmul for all heads: (H*L_ab, L_v) @ (L_v, C_v), then one
    # dense store of the whole output view (no masked per-head lane offsets).
    p2 = p.reshape(num_heads * l_ab, l_v).astype(vir_sm_ref.dtype)
    head_out = jnp.dot(p2, vir_sm_ref[0], preferred_element_type=jnp.float32)
    out_ref[0] = head_out.astype(out_ref.dtype)


def attention_layer(antibody_ft_mat, virus_ft_mat, bias_mat, w_ab, b_ab, w_v, b_v,
                    io_dtype=jnp.bfloat16):
    """antibody_ft_mat: (B, C_ab, L_ab), virus_ft_mat: (B, C_v, L_v),
       bias_mat: (B, L_ab, L_v), w_ab: (H, C_ab), b_ab: (H,), w_v: (H, C_v),
       b_v: (H,).  Returns (B, L_ab, H * C_v), matching the PyTorch module
       (eval mode)."""
    B, C_ab, L_ab = antibody_ft_mat.shape
    _, C_v, L_v = virus_ft_mat.shape
    H = w_ab.shape[0]

    # bf16 on the wire (halved DMA bytes, bf16 MXU on v6e/v7x); fp32 math in
    # the kernel's elementwise/softmax path and fp32 accumulation on the dots.
    ab_cf = antibody_ft_mat.astype(io_dtype)                            # (B, C_ab, L_ab)
    vir_cf = virus_ft_mat.astype(io_dtype)                              # (B, C_v, L_v)
    vir_sm = jnp.transpose(virus_ft_mat, (0, 2, 1)).astype(io_dtype)    # (B, L_v, C_v)
    bias = bias_mat.astype(io_dtype)                                    # (B, L_ab, L_v)
    wab = w_ab.astype(io_dtype)                                         # (H, C_ab)
    wv = w_v.astype(io_dtype)                                           # (H, C_v)
    bsum = (b_ab + b_v).astype(jnp.float32).reshape(H, 1)               # (H, 1) fp32

    out_flat = pl.pallas_call(
        _attention_all_heads_kernel,
        out_shape=jax.ShapeDtypeStruct((B, H * L_ab, C_v), jnp.float32),
        grid=(B,),
        in_specs=[
            pl.BlockSpec((1, C_ab, L_ab), lambda b: (b, 0, 0)),
            pl.BlockSpec((1, C_v, L_v), lambda b: (b, 0, 0)),
            pl.BlockSpec((1, L_v, C_v), lambda b: (b, 0, 0)),
            pl.BlockSpec((1, L_ab, L_v), lambda b: (b, 0, 0)),
            pl.BlockSpec((H, C_ab), lambda b: (0, 0)),   # constant block -> fetched once
            pl.BlockSpec((H, C_v), lambda b: (0, 0)),    # constant block -> fetched once
            pl.BlockSpec((H, 1), lambda b: (0, 0)),      # folded conv biases
        ],
        out_specs=pl.BlockSpec((1, H * L_ab, C_v), lambda b: (b, 0, 0)),
        compiler_params=pltpu.CompilerParams(dimension_semantics=("parallel",)),
    )(ab_cf, vir_cf, vir_sm, bias, wab, wv, bsum)

    # Head concat (torch.cat dim=2): (B, H*L_ab, C_v) -> (B, L_ab, H*C_v).
    # One-off XLA relayout on tiny HBM data; keeps the kernel stores dense.
    out = jnp.transpose(out_flat.reshape(B, H, L_ab, C_v), (0, 2, 1, 3))
    return out.reshape(B, L_ab, H * C_v)


def _reference(antibody, virus, bias, w_ab, b_ab, w_v, b_v):
    """Pure-JAX fp32 reference mirroring the PyTorch forward (eval mode)."""
    H = w_ab.shape[0]
    outs = []
    for h in range(H):
        wa = jnp.einsum('c,bcl->bl', w_ab[h], antibody) + b_ab[h]   # (B, L_ab)
        wvp = jnp.einsum('c,bcl->bl', w_v[h], virus) + b_v[h]       # (B, L_v)
        s = wa[:, :, None] + wvp[:, None, :]                        # (B, L_ab, L_v)
        s = jnp.where(s >= 0, s, 0.2 * s) + bias
        w = jax.nn.softmax(s, axis=-1)
        outs.append(jnp.einsum('bij,bcj->bic', w, virus))           # (B, L_ab, C_v)
    return jnp.concatenate(outs, axis=2)


if __name__ == "__main__":
    B, heads = 2, 2
    antibody_ft_dim, virus_ft_dim = 32, 48
    L_ab, L_v = 8, 16

    key = jax.random.PRNGKey(0)
    k1, k2, k3, k4, k5, k6, k7 = jax.random.split(key, 7)

    antibody_ft_mat = jax.random.normal(k1, (B, antibody_ft_dim, L_ab), jnp.float32)
    virus_ft_mat = jax.random.normal(k2, (B, virus_ft_dim, L_v), jnp.float32)
    bias_mat = jax.random.normal(k3, (B, L_ab, L_v), jnp.float32) * 0.1

    # Deterministic "Conv1d(C, 1, 1)" parameters per head.
    w_ab = jax.random.normal(k4, (heads, antibody_ft_dim), jnp.float32) * 0.1
    b_ab = jax.random.normal(k5, (heads,), jnp.float32) * 0.1
    w_v = jax.random.normal(k6, (heads, virus_ft_dim), jnp.float32) * 0.1
    b_v = jax.random.normal(k7, (heads,), jnp.float32) * 0.1

    out = attention_layer(antibody_ft_mat, virus_ft_mat, bias_mat, w_ab, b_ab, w_v, b_v)
    out = jax.block_until_ready(out)

    ref = _reference(antibody_ft_mat, virus_ft_mat, bias_mat, w_ab, b_ab, w_v, b_v)
    assert out.shape == (B, L_ab, heads * virus_ft_dim), out.shape
    # Tolerance accounts for bf16 input quantization + bf16 MXU operands and
    # the EUP approximate reciprocal in the softmax denominator.
    err = float(jnp.max(jnp.abs(out - ref)))
    assert jnp.allclose(out, ref, atol=3e-2, rtol=3e-2), err

    print("KERNEL_OK")
</pallas_src>

<mosaic_0001>
module attributes {stable_mosaic.version = 11 : i64} {
  func.func @_attention_all_heads_kernel(%arg0: i32, %arg1: memref<1x32x8xbf16, #tpu.memory_space<vmem>>, %arg2: memref<1x48x16xbf16, #tpu.memory_space<vmem>>, %arg3: memref<1x16x48xbf16, #tpu.memory_space<vmem>>, %arg4: memref<1x8x16xbf16, #tpu.memory_space<vmem>>, %arg5: memref<2x32xbf16, #tpu.memory_space<vmem>>, %arg6: memref<2x48xbf16, #tpu.memory_space<vmem>>, %arg7: memref<2x1xf32, #tpu.memory_space<vmem>>, %arg8: memref<1x16x48xf32, #tpu.memory_space<vmem>>) attributes {dimension_semantics = [#tpu.dimension_semantics<parallel>], iteration_bounds = array<i64: 2>, scalar_prefetch = 0 : i64, scratch_operands = 0 : i64, tpu.core_type = #tpu.core_type<tc>, window_params = [{transform_indices = @transform_0, window_bounds = array<i64: 1, 32, 8>}, {transform_indices = @transform_1, window_bounds = array<i64: 1, 48, 16>}, {transform_indices = @transform_2, window_bounds = array<i64: 1, 16, 48>}, {transform_indices = @transform_3, window_bounds = array<i64: 1, 8, 16>}, {pipeline_mode = #tpu.pipeline_mode<synchronous>, transform_indices = @transform_4, window_bounds = array<i64: 2, 32>}, {pipeline_mode = #tpu.pipeline_mode<synchronous>, transform_indices = @transform_5, window_bounds = array<i64: 2, 48>}, {pipeline_mode = #tpu.pipeline_mode<synchronous>, transform_indices = @transform_6, window_bounds = array<i64: 2, 1>}, {transform_indices = @transform_7, window_bounds = array<i64: 1, 16, 48>}]} {
    %c0 = arith.constant 0 : index
    %c0_0 = arith.constant 0 : index
    %0 = vector.load %arg5[%c0, %c0_0] : memref<2x32xbf16, #tpu.memory_space<vmem>>, vector<2x32xbf16>
    %c0_1 = arith.constant 0 : index
    %c0_2 = arith.constant 0 : index
    %c0_3 = arith.constant 0 : index
    %1 = vector.load %arg1[%c0_1, %c0_2, %c0_3] : memref<1x32x8xbf16, #tpu.memory_space<vmem>>, vector<1x32x8xbf16>
    %2 = vector.shape_cast %1 : vector<1x32x8xbf16> to vector<32x8xbf16>
    %cst = arith.constant dense<0.000000e+00> : vector<2x8xf32>
    %3 = tpu.matmul %0, %2, %cst {dimension_numbers = #tpu.dot_dimension_numbers<[1], [0], [0], [1], [0, 0, 1, 1], [], []>} : vector<2x32xbf16>, vector<32x8xbf16>, vector<2x8xf32> -> vector<2x8xf32>
    %c0_4 = arith.constant 0 : index
    %c0_5 = arith.constant 0 : index
    %4 = vector.load %arg6[%c0_4, %c0_5] : memref<2x48xbf16, #tpu.memory_space<vmem>>, vector<2x48xbf16>
    %c0_6 = arith.constant 0 : index
    %c0_7 = arith.constant 0 : index
    %c0_8 = arith.constant 0 : index
    %5 = vector.load %arg2[%c0_6, %c0_7, %c0_8] : memref<1x48x16xbf16, #tpu.memory_space<vmem>>, vector<1x48x16xbf16>
    %6 = vector.shape_cast %5 : vector<1x48x16xbf16> to vector<48x16xbf16>
    %cst_9 = arith.constant dense<0.000000e+00> : vector<2x16xf32>
    %7 = tpu.matmul %4, %6, %cst_9 {dimension_numbers = #tpu.dot_dimension_numbers<[1], [0], [0], [1], [0, 0, 1, 1], [], []>} : vector<2x48xbf16>, vector<48x16xbf16>, vector<2x16xf32> -> vector<2x16xf32>
    %c0_10 = arith.constant 0 : index
    %c0_11 = arith.constant 0 : index
    %8 = vector.load %arg7[%c0_10, %c0_11] : memref<2x1xf32, #tpu.memory_space<vmem>>, vector<2x1xf32>
    %9 = vector.broadcast %8 : vector<2x1xf32> to vector<2x8xf32>
    %10 = arith.addf %3, %9 : vector<2x8xf32>
    %11 = vector.shape_cast %10 : vector<2x8xf32> to vector<2x8x1xf32>
    %12 = vector.shape_cast %7 : vector<2x16xf32> to vector<2x1x16xf32>
    %13 = vector.broadcast %11 : vector<2x8x1xf32> to vector<2x8x16xf32>
    %14 = vector.broadcast %12 : vector<2x1x16xf32> to vector<2x8x16xf32>
    %15 = arith.addf %13, %14 : vector<2x8x16xf32>
    %cst_12 = arith.constant 0.000000e+00 : f32
    %16 = vector.broadcast %cst_12 : f32 to vector<2x8x16xf32>
    %17 = arith.cmpf oge, %15, %16 : vector<2x8x16xf32>
    %cst_13 = arith.constant 2.000000e-01 : f32
    %18 = vector.broadcast %cst_13 : f32 to vector<2x8x16xf32>
    %19 = arith.mulf %18, %15 : vector<2x8x16xf32>
    %20 = arith.select %17, %15, %19 : vector<2x8x16xi1>, vector<2x8x16xf32>
    %c0_14 = arith.constant 0 : index
    %c0_15 = arith.constant 0 : index
    %c0_16 = arith.constant 0 : index
    %21 = vector.load %arg4[%c0_14, %c0_15, %c0_16] : memref<1x8x16xbf16, #tpu.memory_space<vmem>>, vector<1x8x16xbf16>
    %22 = arith.extf %21 : vector<1x8x16xbf16> to vector<1x8x16xf32>
    %23 = vector.broadcast %22 : vector<1x8x16xf32> to vector<2x8x16xf32>
    %24 = arith.addf %20, %23 : vector<2x8x16xf32>
    %cst_17 = arith.constant dense<0xFF800000> : vector<2x8xf32>
    %25 = vector.multi_reduction <maximumf>, %24, %cst_17 [2] : vector<2x8x16xf32> to vector<2x8xf32>
    %26 = vector.shape_cast %25 : vector<2x8xf32> to vector<2x8x1xf32>
    %27 = vector.broadcast %26 : vector<2x8x1xf32> to vector<2x8x16xf32>
    %28 = arith.subf %24, %27 : vector<2x8x16xf32>
    %29 = math.exp %28 : vector<2x8x16xf32>
    %cst_18 = arith.constant dense<0.000000e+00> : vector<2x8xf32>
    %30 = vector.multi_reduction <add>, %29, %cst_18 [2] : vector<2x8x16xf32> to vector<2x8xf32>
    %31 = vector.shape_cast %30 : vector<2x8xf32> to vector<2x8x1xf32>
    %32 = tpu.reciprocal %31 {approx = true} : vector<2x8x1xf32> -> vector<2x8x1xf32>
    %33 = vector.broadcast %32 : vector<2x8x1xf32> to vector<2x8x16xf32>
    %34 = arith.mulf %29, %33 : vector<2x8x16xf32>
    %35 = vector.shape_cast %34 : vector<2x8x16xf32> to vector<16x16xf32>
    %36 = arith.truncf %35 : vector<16x16xf32> to vector<16x16xbf16>
    %c0_19 = arith.constant 0 : index
    %c0_20 = arith.constant 0 : index
    %c0_21 = arith.constant 0 : index
    %37 = vector.load %arg3[%c0_19, %c0_20, %c0_21] : memref<1x16x48xbf16, #tpu.memory_space<vmem>>, vector<1x16x48xbf16>
    %38 = vector.shape_cast %37 : vector<1x16x48xbf16> to vector<16x48xbf16>
    %cst_22 = arith.constant dense<0.000000e+00> : vector<16x48xf32>
    %39 = tpu.matmul %36, %38, %cst_22 {dimension_numbers = #tpu.dot_dimension_numbers<[1], [0], [0], [1], [0, 0, 1, 1], [], []>} : vector<16x16xbf16>, vector<16x48xbf16>, vector<16x48xf32> -> vector<16x48xf32>
    %c0_23 = arith.constant 0 : index
    %c0_24 = arith.constant 0 : index
    %c0_25 = arith.constant 0 : index
    %40 = vector.load %arg8[%c0_23, %c0_24, %c0_25] : memref<1x16x48xf32, #tpu.memory_space<vmem>>, vector<1x16x48xf32>
    %41 = vector.shape_cast %40 : vector<1x16x48xf32> to vector<16x48xf32>
    %42 = vector.shape_cast %39 : vector<16x48xf32> to vector<1x16x48xf32>
    tpu.vector_store %arg8[%c0_23, %c0_24, %c0_25], %42 {strides = array<i32>} : memref<1x16x48xf32, #tpu.memory_space<vmem>>, vector<1x16x48xf32>,
    return
  }
  func.func @transform_0(%arg0: i32) -> (i32, i32, i32) {
    %c0_i32 = arith.constant 0 : i32
    %c0_i32_0 = arith.constant 0 : i32
    %c0_i32_1 = arith.constant 0 : i32
    return %arg0, %c0_i32, %c0_i32_0 : i32, i32, i32
  }
  func.func @transform_1(%arg0: i32) -> (i32, i32, i32) {
    %c0_i32 = arith.constant 0 : i32
    %c0_i32_0 = arith.constant 0 : i32
    %c0_i32_1 = arith.constant 0 : i32
    return %arg0, %c0_i32, %c0_i32_0 : i32, i32, i32
  }
  func.func @transform_2(%arg0: i32) -> (i32, i32, i32) {
    %c0_i32 = arith.constant 0 : i32
    %c0_i32_0 = arith.constant 0 : i32
    %c0_i32_1 = arith.constant 0 : i32
    return %arg0, %c0_i32, %c0_i32_0 : i32, i32, i32
  }
  func.func @transform_3(%arg0: i32) -> (i32, i32, i32) {
    %c0_i32 = arith.constant 0 : i32
    %c0_i32_0 = arith.constant 0 : i32
    %c0_i32_1 = arith.constant 0 : i32
    return %arg0, %c0_i32, %c0_i32_0 : i32, i32, i32
  }
  func.func @transform_4(%arg0: i32) -> (i32, i32) {
    %c0_i32 = arith.constant 0 : i32
    %c0_i32_0 = arith.constant 0 : i32
    %c0_i32_1 = arith.constant 0 : i32
    return %c0_i32, %c0_i32_0 : i32, i32
  }
  func.func @transform_5(%arg0: i32) -> (i32, i32) {
    %c0_i32 = arith.constant 0 : i32
    %c0_i32_0 = arith.constant 0 : i32
    %c0_i32_1 = arith.constant 0 : i32
    return %c0_i32, %c0_i32_0 : i32, i32
  }
  func.func @transform_6(%arg0: i32) -> (i32, i32) {
    %c0_i32 = arith.constant 0 : i32
    %c0_i32_0 = arith.constant 0 : i32
    %c0_i32_1 = arith.constant 0 : i32
    return %c0_i32, %c0_i32_0 : i32, i32
  }
  func.func @transform_7(%arg0: i32) -> (i32, i32, i32) {
    %c0_i32 = arith.constant 0 : i32
    %c0_i32_0 = arith.constant 0 : i32
    %c0_i32_1 = arith.constant 0 : i32
    return %arg0, %c0_i32, %c0_i32_0 : i32, i32, i32
  }
}

</mosaic_0001>

<llo_original>
// kernel: tpu_custom_call.1
$region0: #{tpu_custom_call.1}
  #allocation0 [shape = 'u32[]', space=smem, size = 0x4, offset = 0x4, fixed_abs, tag = 'smem constant byte address 0x4 - core index']
  #allocation1 [shape = 'u32[72,128]{1,0:T(1,128)}', space=vmem, size = 0x9000, scoped, tag = 'internal scratch']
  %s0 = inlined_call_operand.vmem [shape: bf16[2,32,8], index: 0, kind: input, shape index: {}]
  %s1 = inlined_call_operand.vmem [shape: bf16[2,48,16], index: 1, kind: input, shape index: {}]
  %s2 = inlined_call_operand.vmem [shape: bf16[2,16,48], index: 2, kind: input, shape index: {}]
  %s3 = inlined_call_operand.vmem [shape: bf16[2,8,16], index: 3, kind: input, shape index: {}]
  %s4 = inlined_call_operand.vmem [shape: bf16[2,32], index: 4, kind: input, shape index: {}]
  %s5 = inlined_call_operand.vmem [shape: bf16[2,48], index: 5, kind: input, shape index: {}]
  %s6 = inlined_call_operand.vmem [shape: f32[2,1], index: 6, kind: input, shape index: {}]
  %s7 = inlined_call_operand.hbm [shape: f32[2,16,48], index: 7, kind: output, shape index: {}]
  %s8 = sld [smem:[#allocation0]]
  $region61: #{tpu_custom_call.1} parent=0
    _
  %s10 = ssub.s32 1, %s8
  %s11 = scalar_select 0, %s10, %s8
  $region1: #{tpu_custom_call.1} parent=0
    #allocation2 [shape = 'u8[16384]{0}', space=vmem, size = 0x4000, scoped, tag = 'output window, operand 0']
    #allocation3 [shape = 's32[2]{0}', space=sflag, size = 0x8, scoped, tag = 'scoped memory for tpu_custom_call.1']
    %12 = vsyncpa [#allocation3], 0
    %s13 = scalar_lea.sflag [#allocation3], 1
    %14 = vsyncpa %s13, 0
    loop: start=0, step=1, limit=4
    $region2: #{tpu_custom_call.1} parent=1 // loop_pre_header
      _
    $region3: #{tpu_custom_call.1} parent=1 // loop_header
      %s16 = sphi 0, %s20
      %p17 = scmp.ge.s32.totalorder %s16, 4
      %s26 = sphi 0, %s28
      %s29 = sphi 0, %s26
      %s30 = sphi 0, %s29
      %s46 = sphi 0, %s30
      %s52 = sphi 0, %s54
      %s55 = sphi 0, %s52
      %s56 = sphi 0, %s55
      %s72 = sphi 0, %s56
      %s78 = sphi 0, %s80
      %s81 = sphi 0, %s78
      %s82 = sphi 0, %s81
      %s98 = sphi 0, %s82
      %s104 = sphi 0, %s106
      %s107 = sphi 0, %s104
      %s108 = sphi 0, %s107
      %s124 = sphi 0, %s108
      %s128 = sphi 0, %s128
      %s130 = sphi 0, %s128
      %s131 = sphi 0, %s130
      %s145 = sphi 0, %s131
      %s149 = sphi 0, %s149
      %s151 = sphi 0, %s149
      %s152 = sphi 0, %s151
      %s166 = sphi 0, %s152
      %s170 = sphi 0, %s170
      %s172 = sphi 0, %s170
      %s173 = sphi 0, %s172
      %s187 = sphi 0, %s173
      %s193 = sphi 0, %s195
      %s196 = sphi 0, %s193
      %s197 = sphi 0, %s196
      %s213 = sphi 0, %s197
    $region4: #{tpu_custom_call.1} parent=1 // loop_header_branch
      %19 = sbr.rel (%p17) target = $region8
    $region5: #{tpu_custom_call.1} parent=1 // loop_body
      %s21 = ssub.s32 %s16, 1
      %s22 = ssub.s32 %s16, 2
      %s23 = sadd.s32 %s16, 1
      %s24 = ssub.s32 %s16, %s23
      %p25 = scmp.eq.s32.totalorder %s24, 0
      %s27 = sadd.s32 %s26, 1
      %s28 = scalar_select %p25, %s26, %s27
      %p31 = pneg %p25
      %p32 = scmp.eq.s32.totalorder %s16, 1
      %p33 = por %p31, %p32
      %p34 = scmp.ne.s32.totalorder %s26, %s29
      %p35 = scmp.eq.s32.totalorder %s16, 0
      %p36 = por %p34, %p35
      %p37 = scmp.ne.s32.totalorder %s26, %s29
      %p38 = scmp.eq.s32.totalorder %s21, 1
      %p39 = por %p37, %p38
      %p40 = scmp.ne.s32.totalorder %s29, %s30
      %p41 = scmp.eq.s32.totalorder %s21, 0
      %p42 = por %p40, %p41
      %p43 = scmp.ne.s32.totalorder %s29, %s30
      %p44 = scmp.eq.s32.totalorder %s22, 1
      %p45 = por %p43, %p44
      %p47 = scmp.ne.s32.totalorder %s30, %s46
      %p48 = scmp.eq.s32.totalorder %s22, 0
      %p49 = por %p47, %p48
      %s50 = ssub.s32 %s16, %s23
      %p51 = scmp.eq.s32.totalorder %s50, 0
      %s53 = sadd.s32 %s52, 1
      %s54 = scalar_select %p51, %s52, %s53
      %p57 = pneg %p51
      %p58 = scmp.eq.s32.totalorder %s16, 1
      %p59 = por %p57, %p58
      %p60 = scmp.ne.s32.totalorder %s52, %s55
      %p61 = scmp.eq.s32.totalorder %s16, 0
      %p62 = por %p60, %p61
      %p63 = scmp.ne.s32.totalorder %s52, %s55
      %p64 = scmp.eq.s32.totalorder %s21, 1
      %p65 = por %p63, %p64
      %p66 = scmp.ne.s32.totalorder %s55, %s56
      %p67 = scmp.eq.s32.totalorder %s21, 0
      %p68 = por %p66, %p67
      %p69 = scmp.ne.s32.totalorder %s55, %s56
      %p70 = scmp.eq.s32.totalorder %s22, 1
      %p71 = por %p69, %p70
      %p73 = scmp.ne.s32.totalorder %s56, %s72
      %p74 = scmp.eq.s32.totalorder %s22, 0
      %p75 = por %p73, %p74
      %s76 = ssub.s32 %s16, %s23
      %p77 = scmp.eq.s32.totalorder %s76, 0
      %s79 = sadd.s32 %s78, 1
      %s80 = scalar_select %p77, %s78, %s79
      %p83 = pneg %p77
      %p84 = scmp.eq.s32.totalorder %s16, 1
      %p85 = por %p83, %p84
      %p86 = scmp.ne.s32.totalorder %s78, %s81
      %p87 = scmp.eq.s32.totalorder %s16, 0
      %p88 = por %p86, %p87
      %p89 = scmp.ne.s32.totalorder %s78, %s81
      %p90 = scmp.eq.s32.totalorder %s21, 1
      %p91 = por %p89, %p90
      %p92 = scmp.ne.s32.totalorder %s81, %s82
      %p93 = scmp.eq.s32.totalorder %s21, 0
      %p94 = por %p92, %p93
      %p95 = scmp.ne.s32.totalorder %s81, %s82
      %p96 = scmp.eq.s32.totalorder %s22, 1
      %p97 = por %p95, %p96
      %p99 = scmp.ne.s32.totalorder %s82, %s98
      %p100 = scmp.eq.s32.totalorder %s22, 0
      %p101 = por %p99, %p100
      %s102 = ssub.s32 %s16, %s23
      %p103 = scmp.eq.s32.totalorder %s102, 0
      %s105 = sadd.s32 %s104, 1
      %s106 = scalar_select %p103, %s104, %s105
      %p109 = pneg %p103
      %p110 = scmp.eq.s32.totalorder %s16, 1
      %p111 = por %p109, %p110
      %p112 = scmp.ne.s32.totalorder %s104, %s107
      %p113 = scmp.eq.s32.totalorder %s16, 0
      %p114 = por %p112, %p113
      %p115 = scmp.ne.s32.totalorder %s104, %s107
      %p116 = scmp.eq.s32.totalorder %s21, 1
      %p117 = por %p115, %p116
      %p118 = scmp.ne.s32.totalorder %s107, %s108
      %p119 = scmp.eq.s32.totalorder %s21, 0
      %p120 = por %p118, %p119
      %p121 = scmp.ne.s32.totalorder %s107, %s108
      %p122 = scmp.eq.s32.totalorder %s22, 1
      %p123 = por %p121, %p122
      %p125 = scmp.ne.s32.totalorder %s108, %s124
      %p126 = scmp.eq.s32.totalorder %s22, 0
      %p127 = por %p125, %p126
      %s129 = sadd.s32 %s128, 1
      %p132 = scmp.eq.s32.totalorder %s16, 1
      %p133 = scmp.ne.s32.totalorder %s128, %s130
      %p134 = scmp.eq.s32.totalorder %s16, 0
      %p135 = por %p133, %p134
      %p136 = scmp.ne.s32.totalorder %s128, %s130
      %p137 = scmp.eq.s32.totalorder %s21, 1
      %p138 = por %p136, %p137
      %p139 = scmp.ne.s32.totalorder %s130, %s131
      %p140 = scmp.eq.s32.totalorder %s21, 0
      %p141 = por %p139, %p140
      %p142 = scmp.ne.s32.totalorder %s130, %s131
      %p143 = scmp.eq.s32.totalorder %s22, 1
      %p144 = por %p142, %p143
      %p146 = scmp.ne.s32.totalorder %s131, %s145
      %p147 = scmp.eq.s32.totalorder %s22, 0
      %p148 = por %p146, %p147
      %s150 = sadd.s32 %s149, 1
      %p153 = scmp.eq.s32.totalorder %s16, 1
      %p154 = scmp.ne.s32.totalorder %s149, %s151
      %p155 = scmp.eq.s32.totalorder %s16, 0
      %p156 = por %p154, %p155
      %p157 = scmp.ne.s32.totalorder %s149, %s151
      %p158 = scmp.eq.s32.totalorder %s21, 1
      %p159 = por %p157, %p158
      %p160 = scmp.ne.s32.totalorder %s151, %s152
      %p161 = scmp.eq.s32.totalorder %s21, 0
      %p162 = por %p160, %p161
      %p163 = scmp.ne.s32.totalorder %s151, %s152
      %p164 = scmp.eq.s32.totalorder %s22, 1
      %p165 = por %p163, %p164
      %p167 = scmp.ne.s32.totalorder %s152, %s166
      %p168 = scmp.eq.s32.totalorder %s22, 0
      %p169 = por %p167, %p168
      %s171 = sadd.s32 %s170, 1
      %p174 = scmp.eq.s32.totalorder %s16, 1
      %p175 = scmp.ne.s32.totalorder %s170, %s172
      %p176 = scmp.eq.s32.totalorder %s16, 0
      %p177 = por %p175, %p176
      %p178 = scmp.ne.s32.totalorder %s170, %s172
      %p179 = scmp.eq.s32.totalorder %s21, 1
      %p180 = por %p178, %p179
      %p181 = scmp.ne.s32.totalorder %s172, %s173
      %p182 = scmp.eq.s32.totalorder %s21, 0
      %p183 = por %p181, %p182
      %p184 = scmp.ne.s32.totalorder %s172, %s173
      %p185 = scmp.eq.s32.totalorder %s22, 1
      %p186 = por %p184, %p185
      %p188 = scmp.ne.s32.totalorder %s173, %s187
      %p189 = scmp.eq.s32.totalorder %s22, 0
      %p190 = por %p188, %p189
      %s191 = ssub.s32 %s16, %s23
      %p192 = scmp.eq.s32.totalorder %s191, 0
      %s194 = sadd.s32 %s193, 1
      %s195 = scalar_select %p192, %s193, %s194
      %p198 = pneg %p192
      %p199 = scmp.eq.s32.totalorder %s16, 1
      %p200 = por %p198, %p199
      %p201 = scmp.ne.s32.totalorder %s193, %s196
      %p202 = scmp.eq.s32.totalorder %s16, 0
      %p203 = por %p201, %p202
      %p204 = scmp.ne.s32.totalorder %s193, %s196
      %p205 = scmp.eq.s32.totalorder %s21, 1
      %p206 = por %p204, %p205
      %p207 = scmp.ne.s32.totalorder %s196, %s197
      %p208 = scmp.eq.s32.totalorder %s21, 0
      %p209 = por %p207, %p208
      %p210 = scmp.ne.s32.totalorder %s196, %s197
      %p211 = scmp.eq.s32.totalorder %s22, 1
      %p212 = por %p210, %p211
      %p214 = scmp.ne.s32.totalorder %s197, %s213
      %p215 = scmp.eq.s32.totalorder %s22, 0
      %p216 = por %p214, %p215
      %p217 = scmp.le.s32.totalorder 1, %s16
      %p218 = scmp.lt.s32.totalorder %s16, 3
      %p219 = pnand %p217, %p218
      %p220 = pneg %p219
      // Predicated region
      $region9: #{tpu_custom_call.1} parent=5 // pred_check
        _
      $region10: #{tpu_custom_call.1} parent=5 // pred_check_branch
        %222 = sbr.rel (%p219) target = $region12
      $region11: #{tpu_custom_call.1} parent=5 // pred_region
        %s223 = ssub.s32 %s16, 1
        // Predicated region
        $region13: #{tpu_custom_call.1} parent=11 // pred_check
          %p224 = pneg %p141
        $region14: #{tpu_custom_call.1} parent=11 // pred_check_branch
          %226 = sbr.rel (%p224) target = $region16
        $region15: #{tpu_custom_call.1} parent=11 // pred_region
          _
        $region16: #{tpu_custom_call.1} parent=11 // pred_fallthru
          _
        // Predicated region
        $region17: #{tpu_custom_call.1} parent=11 // pred_check
          %p227 = pneg %p162
        $region18: #{tpu_custom_call.1} parent=11 // pred_check_branch
          %229 = sbr.rel (%p227) target = $region20
        $region19: #{tpu_custom_call.1} parent=11 // pred_region
          _
        $region20: #{tpu_custom_call.1} parent=11 // pred_fallthru
          _
        // Predicated region
        $region21: #{tpu_custom_call.1} parent=11 // pred_check
          %p230 = pneg %p183
        $region22: #{tpu_custom_call.1} parent=11 // pred_check_branch
          %232 = sbr.rel (%p230) target = $region24
        $region23: #{tpu_custom_call.1} parent=11 // pred_region
          _
        $region24: #{tpu_custom_call.1} parent=11 // pred_fallthru
          _
      $region12: #{tpu_custom_call.1} parent=5 // pred_fallthru
        _
      %p233 = scmp.lt.s32.totalorder %s16, 2
      // Predicated region
      $region25: #{tpu_custom_call.1} parent=5 // pred_check
        %p234 = pneg %p233
      $region26: #{tpu_custom_call.1} parent=5 // pred_check_branch
        %236 = sbr.rel (%p234) target = $region28
      $region27: #{tpu_custom_call.1} parent=5 // pred_region
        // Predicated region
        $region29: #{tpu_custom_call.1} parent=27 // pred_check
          %p237 = pneg %p36
        $region30: #{tpu_custom_call.1} parent=27 // pred_check_branch
          %239 = sbr.rel (%p237) target = $region32
        $region31: #{tpu_custom_call.1} parent=27 // pred_region
          %p240 = scmp.lt.s32.totalorder %s16, 1
          %s241 = scalar_select %p240, %s16, 1
          %s242 = smul.addr %s241, 4
          %s243 = smul.addr %s242, 4
          %s244 = scalar_lea.vmem %s0, %s243
        $region32: #{tpu_custom_call.1} parent=27 // pred_fallthru
          _
        // Predicated region
        $region33: #{tpu_custom_call.1} parent=27 // pred_check
          %p245 = pneg %p62
        $region34: #{tpu_custom_call.1} parent=27 // pred_check_branch
          %247 = sbr.rel (%p245) target = $region36
        $region35: #{tpu_custom_call.1} parent=27 // pred_region
          %p248 = scmp.lt.s32.totalorder %s16, 1
          %s249 = scalar_select %p248, %s16, 1
          %s250 = smul.addr %s249, 6
          %s251 = smul.addr %s250, 4
          %s252 = scalar_lea.vmem %s1, %s251
        $region36: #{tpu_custom_call.1} parent=27 // pred_fallthru
          _
        // Predicated region
        $region37: #{tpu_custom_call.1} parent=27 // pred_check
          %p253 = pneg %p88
        $region38: #{tpu_custom_call.1} parent=27 // pred_check_branch
          %255 = sbr.rel (%p253) target = $region40
        $region39: #{tpu_custom_call.1} parent=27 // pred_region
          %p256 = scmp.lt.s32.totalorder %s16, 1
          %s257 = scalar_select %p256, %s16, 1
          %s258 = smul.addr %s257, 2
          %s259 = smul.addr %s258, 4
          %s260 = scalar_lea.vmem %s2, %s259
        $region40: #{tpu_custom_call.1} parent=27 // pred_fallthru
          _
        // Predicated region
        $region41: #{tpu_custom_call.1} parent=27 // pred_check
          %p261 = pneg %p114
        $region42: #{tpu_custom_call.1} parent=27 // pred_check_branch
          %263 = sbr.rel (%p261) target = $region44
        $region43: #{tpu_custom_call.1} parent=27 // pred_region
          %p264 = scmp.lt.s32.totalorder %s16, 1
          %s265 = scalar_select %p264, %s16, 1
          %s266 = smul.addr %s265, 4
          %s267 = scalar_lea.vmem %s3, %s266
        $region44: #{tpu_custom_call.1} parent=27 // pred_fallthru
          _
      $region28: #{tpu_custom_call.1} parent=5 // pred_fallthru
        _
      %p268 = scmp.le.s32.totalorder 1, %s16
      %p269 = scmp.lt.s32.totalorder %s16, 3
      %p270 = pnand %p268, %p269
      %p271 = pneg %p270
      // Predicated region
      $region45: #{tpu_custom_call.1} parent=5 // pred_check
        _
      $region46: #{tpu_custom_call.1} parent=5 // pred_check_branch
        %273 = sbr.rel (%p270) target = $region48
      $region47: #{tpu_custom_call.1} parent=5 // pred_region
        %s274 = ssub.s32 %s16, 1
        %p275 = scmp.lt.s32.totalorder %s21, 1
        %s276 = scalar_select %p275, %s21, 1
        %s277 = smul.addr %s276, 4
        %s278 = smul.addr %s277, 4
        %s279 = scalar_lea.vmem %s0, %s278
        %p280 = pneg %p42
        %p281 = pneg %p39
        %p282 = scmp.lt.s32.totalorder %s21, 1
        %s283 = scalar_select %p282, %s21, 1
        %s284 = smul.addr %s283, 6
        %s285 = smul.addr %s284, 4
        %s286 = scalar_lea.vmem %s1, %s285
        %p287 = pneg %p68
        %p288 = pneg %p65
        %p289 = scmp.lt.s32.totalorder %s21, 1
        %s290 = scalar_select %p289, %s21, 1
        %s291 = smul.addr %s290, 2
        %s292 = smul.addr %s291, 4
        %s293 = scalar_lea.vmem %s2, %s292
        %p294 = pneg %p94
        %p295 = pneg %p91
        %p296 = scmp.lt.s32.totalorder %s21, 1
        %s297 = scalar_select %p296, %s21, 1
        %s298 = smul.addr %s297, 4
        %s299 = scalar_lea.vmem %s3, %s298
        %p300 = pneg %p120
        %p301 = pneg %p117
        %p302 = pneg %p141
        %p303 = pneg %p138
        %p304 = pneg %p162
        %p305 = pneg %p159
        %p306 = pneg %p183
        %p307 = pneg %p180
        %p308 = pneg %p209
        %p309 = pneg %p206
        %s310 = sand.u32 %s196, 1
        %s311 = scalar_lea.sflag [#allocation3], %s310
        %s312 = sand.u32 %s196, 1
        %s313 = smul.addr %s312, 16
        %s314 = scalar_lea.vmem [#allocation2], %s313
        %p315 = scmp.lt.s32.totalorder %s21, 1
        %s316 = scalar_select %p315, %s21, 1
        %s317 = smul.addr %s316, 4
        %s318 = smul.addr %s317, 4
        %s319 = scalar_lea.vmem %s0, %s318
        %p320 = scmp.lt.s32.totalorder %s21, 1
        %s321 = scalar_select %p320, %s21, 1
        %s322 = smul.addr %s321, 6
        %s323 = smul.addr %s322, 4
        %s324 = scalar_lea.vmem %s1, %s323
        %p325 = scmp.lt.s32.totalorder %s21, 1
        %s326 = scalar_select %p325, %s21, 1
        %s327 = smul.addr %s326, 2
        %s328 = smul.addr %s327, 4
        %s329 = scalar_lea.vmem %s2, %s328
        %p330 = scmp.lt.s32.totalorder %s21, 1
        %s331 = scalar_select %p330, %s21, 1
        %s332 = smul.addr %s331, 4
        %s333 = scalar_lea.vmem %s3, %s332
        %v335 = vld [vmem:[%s4] sm:$0x1]
        %v336 = vld [vmem:[%s319] sm:$0xf]
        %v337 = vld [vmem:[%s319 + $0x4] sm:$0xf]
        %v338 = vld [vmem:[%s319 + $0x8] sm:$0xf]
        %v339 = vld [vmem:[%s319 + $0xc] sm:$0xf]
        %v340 = vld [vmem:[%s5] sm:$0x1]
        %v341 = vld [vmem:[%s324] sm:$0xf]
        %v342 = vld [vmem:[%s324 + $0x4] sm:$0xf]
        %v343 = vld [vmem:[%s324 + $0x8] sm:$0xf]
        %v344 = vld [vmem:[%s324 + $0xc] sm:$0xf]
        %v345 = vld [vmem:[%s324 + $0x10] sm:$0xf]
        %v346 = vld [vmem:[%s324 + $0x14] sm:$0xf]
        %v353 = vunpack.c.l.b16 %v341
        %v354 = vunpack.c.l.b16 %v342
        %v355 = vunpack.c.l.b16 %v343
        %v356 = vunpack.c.l.b16 %v344
        %v357 = vunpack.c.l.b16 %v345
        %v358 = vunpack.c.l.b16 %v346
        %v359 = vpack.c.b16 %v354, %v353
        %v360 = vpack.c.b16 %v356, %v355
        %v361 = vpack.c.b16 %v358, %v357
        %vm365 = vcmask 392192
        %v367 = vsel %vm365, %v340, 0
        %369 = vmatpush.bf16.msra.mxu0 0
        %370 = vmatpush.bf16.msra.mxu0 0
        %371 = vmatpush.bf16.msra.mxu0 0
        %372 = vmatpush.bf16.msra.mxu0 0
        %373 = vmatpush.bf16.msra.mxu0 0
        %374 = vmatpush.bf16.msra.mxu0 %v361
        %375 = vmatpush.bf16.msra.mxu0 %v360
        %376 = vmatpush.bf16.msra.mxu0 %v359
        %377 = vmatmul.bf16.gmra.mxu0 %v367
        %v378 = vpop.f32.mrf.mxu0
        %v379 = vadd.f32 0.0, %v378
        %v380 = vpop.f32.mrf.mxu0
        %381 = vdwg.mxu0
        %v382 = vld [vmem:[%s6] sm:$0x3]
        %384 = vset.pattern.permute.xlu0 0
        %385 = vperm.xlu0 %384, %v382
        %v386 = vpop.permute.xlu0 %385
        %v392 = vunpack.c.l.b16 %v336
        %v393 = vunpack.c.l.b16 %v337
        %v394 = vunpack.c.l.b16 %v338
        %v395 = vunpack.c.l.b16 %v339
        %v396 = vpack.c.b16 %v393, %v392
        %v397 = vpack.c.b16 %v395, %v394
        %vm400 = vcmask 261120
        %v402 = vsel %vm400, %v335, 0
        %404 = vmatpush.bf16.msra.mxu0 0
        %405 = vmatpush.bf16.msra.mxu0 0
        %406 = vmatpush.bf16.msra.mxu0 0
        %407 = vmatpush.bf16.msra.mxu0 0
        %408 = vmatpush.bf16.msra.mxu0 0
        %409 = vmatpush.bf16.msra.mxu0 0
        %410 = vmatpush.bf16.msra.mxu0 %v397
        %411 = vmatpush.bf16.msra.mxu0 %v396
        %412 = vmatmul.bf16.gmra.mxu0 %v402
        %v413 = vpop.f32.mrf.mxu0
        %v414 = vadd.f32 %v386, %v413
        %v415 = vpop.f32.mrf.mxu0
        %416 = vdwg.mxu0
        %v417 = vperm.slane %v414, 0
        %v418 = vlaneseq
        %v419 = vshrl.u32 %v418, 7
        %421 = vset.pattern.permute.xlu0 %v419
        %422 = vperm.xlu0 %421, %v417
        %v423 = vpop.permute.xlu0 %422
        %v424 = vperm.slane %v414, 1
        %v425 = vlaneseq
        %v426 = vshrl.u32 %v425, 7
        %428 = vset.pattern.permute.xlu0 %v426
        %429 = vperm.xlu0 %428, %v424
        %v430 = vpop.permute.xlu0 %429
        %v432 = vrot.slane %v379, 1
        %v433 = vperm.slane %v379, 0
        %v434 = vperm.slane %v432, 0
        %v437 = vadd.f32 %v423, %v433
        %v438 = vadd.f32 %v430, %v434
        %vm439 = vcmp.ge.f32.partialorder %v437, 0.0
        %vm440 = vcmp.ge.f32.partialorder %v438, 0.0
        %v441 = vmul.f32 %v437, 0.2
        %v442 = vmul.f32 %v438, 0.2
        %v443 = vsel %vm439, %v437, %v441
        %v444 = vsel %vm440, %v438, %v442
        %v445 = vld [vmem:[%s333] sm:$0xf]
        %v446 = vunpack.c.l.bf16 %v445
        %v447 = vadd.f32 %v443, %v446
        %v448 = vadd.f32 %v444, %v446
        %vm449 = vcmask 130048
        %v450 = vsel %vm449, %v447, -inf
        %451 = vmax.xlane.f32.xlu0 %v450
        %v452 = vpop.xlane.xlu0 %451
        %v453 = vsel %vm449, %v448, -inf
        %454 = vmax.xlane.f32.xlu0 %v453
        %v455 = vpop.xlane.xlu0 %454
        %v456 = vsub.f32 %v447, %v452
        %v457 = vsub.f32 %v448, %v455
        %v458 = vmul.f32 %v456, 1.442695
        %v459 = vpow.pop %v458
        %v460 = vmul.f32 %v457, 1.442695
        %v461 = vpow.pop %v460
        %v462 = vsel %vm449, %v459, 0.0
        %463 = vadd.xlane.f32.xlu0 %v462
        %v464 = vpop.xlane.xlu0 %463
        %v465 = vsel %vm449, %v461, 0.0
        %466 = vadd.xlane.f32.xlu0 %v465
        %v467 = vpop.xlane.xlu0 %466
        %v468 = vrcp.pop %v464
        %v469 = vrcp.pop %v467
        %v470 = vmul.f32 %v459, %v468
        %v471 = vmul.f32 %v461, %v469
        %v472 = vpack.c.bf16 %v471, %v470
        %v473 = vld [vmem:[%s329] sm:$0xf]
        %v474 = vld [vmem:[%s329 + $0x4] sm:$0xf]
        %v477 = vunpack.c.l.b16 %v473
        %v478 = vunpack.c.l.b16 %v474
        %v479 = vpack.c.b16 %v478, %v477
        %v482 = vsel %vm449, %v472, 0
        %484 = vmatpush.bf16.msra.mxu0 0
        %485 = vmatpush.bf16.msra.mxu0 0
        %486 = vmatpush.bf16.msra.mxu0 0
        %487 = vmatpush.bf16.msra.mxu0 0
        %488 = vmatpush.bf16.msra.mxu0 0
        %489 = vmatpush.bf16.msra.mxu0 0
        %490 = vmatpush.bf16.msra.mxu0 0
        %491 = vmatpush.bf16.msra.mxu0 %v479
        %492 = vmatmul.bf16.gmra.mxu0 %v482
        %v493 = vpop.f32.mrf.mxu0
        %v494 = vadd.f32 0.0, %v493
        %v495 = vpop.f32.mrf.mxu0
        %v496 = vadd.f32 0.0, %v495
        %497 = vdwg.mxu0
        %498 = vst.msk [vmem:[%s314] sm:$0xff] %vm365, %v494
        %499 = vst.msk [vmem:[%s314 + $0x8] sm:$0xff] %vm365, %v496
        %s500 = sand.u32 %s196, 1
        %s501 = scalar_lea.sflag [#allocation3], %s500
        %s502 = sand.u32 %s196, 1
        %s503 = smul.addr %s502, 16
        %s504 = scalar_lea.vmem [#allocation2], %s503
        // Predicated region
        $region49: #{tpu_custom_call.1} parent=47 // pred_check
          %p505 = pneg %p206
        $region50: #{tpu_custom_call.1} parent=47 // pred_check_branch
          %507 = sbr.rel (%p505) target = $region52
        $region51: #{tpu_custom_call.1} parent=47 // pred_region
          %509 = vsyncadd %s501, 0
          %s510 = smul.addr %s21, 2
          %s511 = smul.addr %s510, 8
          %s512 = scalar_lea.hbm %s7, %s511
          %s513 = sshll.u32 %s504, 4
          %s514 = int_to_ptr.vmem [resolvable:$true] %s513
          %s515 = sshll.u32 %s512, 4
          %s516 = int_to_ptr.hbm [resolvable:$true] %s515
          %521 = dma.vmem_to_hbm [thread:$0]  %s514, 256, %s516, %s501, 128, 128, 8
        $region52: #{tpu_custom_call.1} parent=47 // pred_fallthru
          _
      $region48: #{tpu_custom_call.1} parent=5 // pred_fallthru
        _
      %p522 = scmp.le.s32.totalorder 2, %s16
      // Predicated region
      $region53: #{tpu_custom_call.1} parent=5 // pred_check
        %p523 = pneg %p522
      $region54: #{tpu_custom_call.1} parent=5 // pred_check_branch
        %525 = sbr.rel (%p523) target = $region56
      $region55: #{tpu_custom_call.1} parent=5 // pred_region
        %s526 = ssub.s32 %s16, 2
        // Predicated region
        $region57: #{tpu_custom_call.1} parent=55 // pred_check
          %p527 = pneg %p212
        $region58: #{tpu_custom_call.1} parent=55 // pred_check_branch
          %529 = sbr.rel (%p527) target = $region60
        $region59: #{tpu_custom_call.1} parent=55 // pred_region
          %s530 = sand.u32 %s197, 1
          %s531 = scalar_lea.sflag [#allocation3], %s530
          %s532 = sand.u32 %s197, 1
          %s533 = smul.addr %s532, 16
          %s534 = scalar_lea.vmem [#allocation2], %s533
          %536 = dma.done %s531, 256
        $region60: #{tpu_custom_call.1} parent=55 // pred_fallthru
          _
      $region56: #{tpu_custom_call.1} parent=5 // pred_fallthru
        _
    $region6: #{tpu_custom_call.1} parent=1 // loop_footer
      %s20 = sadd.s32 1, %s16
    $region7: #{tpu_custom_call.1} parent=1 // loop_footer_branch
      %15 = sbr.rel target = $region3
    $region8: #{tpu_custom_call.1} parent=1 // loop_exit
      _
    %537 = vsyncpa [#allocation3], 1
    %s538 = scalar_lea.sflag [#allocation3], 1
    %539 = vsyncpa %s538, 1

</llo_original>
